<compile_context>
chip_gen: v7x
topology: tpu7x:2x2x1
jax: 0.10.0
libtpu: 0.0.40
codegen_flags: <defaults>
</compile_context>

<pallas_src>
import functools

import jax
import jax.numpy as jnp
from jax.experimental import pallas as pl
from jax.experimental.pallas import tpu as pltpu


LANE = 128  # lane-dense padding quantum (vreg lane width)


def _round_up(x, m):
    return (x + m - 1) // m * m


def _pad2(x, rows, cols):
    r, c = x.shape
    return jnp.pad(x, ((0, rows - r), (0, cols - c)))


# ----------------------------- Pallas kernel ------------------------------- #

def _fused_gcn_kernel(*refs, num_layers, out_dims, with_ln, eps, f_pad):
    """refs = (a, x, [w, b, (gamma, beta)?] * num_layers, out)."""
    a_ref, x_ref = refs[0], refs[1]
    o_ref = refs[-1]

    a = a_ref[...]                       # bf16 [N_PAD, N_PAD]
    h = x_ref[...]                       # bf16 [N_PAD, F_PAD]
    lane = jax.lax.broadcasted_iota(jnp.int32, (1, f_pad), 1)

    idx = 2
    for i in range(num_layers):
        last = (i == num_layers - 1)
        w_ref, b_ref = refs[idx], refs[idx + 1]
        idx += 2

        # X @ W then A_hat @ (XW), both on the MXU with f32 accumulation.
        xw = jnp.dot(h, w_ref[...], preferred_element_type=jnp.float32)
        hf = jnp.dot(a, xw.astype(jnp.bfloat16),
                     preferred_element_type=jnp.float32)
        hf = hf + b_ref[...]             # bias [1, F_PAD] broadcast (f32)

        if not last:
            if with_ln:                  # LayerNorm over the REAL feature dim
                g_ref, be_ref = refs[idx], refs[idx + 1]
                idx += 2
                f_real = out_dims[i]
                mask = lane < f_real     # padded lanes excluded from stats
                inv_f = 1.0 / f_real
                hm = jnp.where(mask, hf, 0.0)          # explicit lane mask
                mean = jnp.sum(hm, axis=-1, keepdims=True) * inv_f
                centered = jnp.where(mask, hf - mean, 0.0)
                var = jnp.sum(centered * centered, axis=-1,
                              keepdims=True) * inv_f
                hf = centered * jax.lax.rsqrt(var + eps)
                hf = hf * g_ref[...] + be_ref[...]
            hf = jnp.maximum(hf, 0.0)    # ReLU (f32)
            h = hf.astype(jnp.bfloat16)  # re-feed MXU in bf16
        else:
            h = hf

    o_ref[...] = h.astype(o_ref.dtype)


# --------------------- One-time parameter / input prep ---------------------- #

def prepare_gcn_params(params, *, with_ln=True, lane=LANE):
    """Pad + bf16-cast all layer weights ONCE (hoisted out of the forward)."""
    num_layers = len(params)
    dims = tuple([params[0]["w"].shape[0]] + [p["w"].shape[1] for p in params])
    f_pad = _round_up(max(dims + (lane,)), lane)
    prepped = []
    for li, p in enumerate(params):
        entry = {
            "w": _pad2(p["w"], f_pad, f_pad).astype(jnp.bfloat16),
            "b": _pad2(p["b"], 1, f_pad).astype(jnp.float32),
        }
        if with_ln and li != num_layers - 1:
            entry["gamma"] = _pad2(p["gamma"], 1, f_pad).astype(jnp.float32)
            entry["beta"] = _pad2(p["beta"], 1, f_pad).astype(jnp.float32)
        prepped.append(entry)
    return prepped, dims, f_pad


def prepare_node_features(x, n_pad, f_pad):
    """One-time pad + bf16 cast of node features."""
    return _pad2(x, n_pad, f_pad).astype(jnp.bfloat16)


def gcn_norm_dense(edge_index, num_nodes, *, pad_to=None, dtype=jnp.float32):
    """Dense D^-1/2 (A + I) D^-1/2 with PyG gcn_norm semantics (edge_weight=1,
    add self-loops, aggregate at target/col).  Optionally zero-padded to
    pad_to x pad_to and cast (e.g. bf16) so the kernel input needs no further
    per-call preprocessing."""
    row, col = edge_index[0], edge_index[1]
    loop = jnp.arange(num_nodes, dtype=row.dtype)
    row = jnp.concatenate([row, loop])
    col = jnp.concatenate([col, loop])
    ew = jnp.ones(row.shape[0], jnp.float32)
    deg = jnp.zeros((num_nodes,), jnp.float32).at[col].add(ew)
    dinv = jnp.where(deg > 0, 1.0 / jnp.sqrt(deg), 0.0)
    norm = dinv[row] * ew * dinv[col]
    # message from source=row aggregated at target=col  =>  out = A_hat @ x
    a_hat = jnp.zeros((num_nodes, num_nodes), jnp.float32).at[col, row].add(norm)
    if pad_to is not None and pad_to > num_nodes:
        pad = pad_to - num_nodes
        a_hat = jnp.pad(a_hat, ((0, pad), (0, pad)))
    # TODO(synk): bf16 A_hat loses mantissa on edge weights; for deep stacks
    # keep A_hat f32 for the second matmul.
    return a_hat.astype(dtype)


# ------------------------------- Forward ------------------------------------ #

@functools.partial(jax.jit,
                   static_argnames=("num_nodes", "dims", "with_ln", "eps"))
def gcn_forward(prepped_params, x_p, a_hat_p, *, num_nodes, dims,
                with_ln=True, eps=1e-6):
    """Fused multi-layer GCN forward on pre-padded bf16 inputs.

    Returns (logits[num_nodes, num_class], None, None)."""
    n_pad, f_pad = x_p.shape
    num_layers = len(prepped_params)
    num_class = dims[-1]

    inputs = [a_hat_p, x_p]
    in_specs = [
        pl.BlockSpec((n_pad, n_pad), lambda i: (0, 0)),    # A_hat (padded)
        pl.BlockSpec((n_pad, f_pad), lambda i: (0, 0)),    # X     (padded)
    ]
    for li, p in enumerate(prepped_params):
        inputs += [p["w"], p["b"]]
        in_specs += [pl.BlockSpec((f_pad, f_pad), lambda i: (0, 0)),
                     pl.BlockSpec((1, f_pad), lambda i: (0, 0))]
        if with_ln and li != num_layers - 1:               # LN operands only when used
            inputs += [p["gamma"], p["beta"]]
            in_specs += [pl.BlockSpec((1, f_pad), lambda i: (0, 0)),
                         pl.BlockSpec((1, f_pad), lambda i: (0, 0))]

    kernel = functools.partial(
        _fused_gcn_kernel, num_layers=num_layers, out_dims=dims[1:],
        with_ln=with_ln, eps=eps, f_pad=f_pad)

    # Honest cost estimate: real (unpadded) dims and actual byte widths.
    flops = 0
    param_bytes = 0
    for i in range(num_layers):
        f_in, f_out = dims[i], dims[i + 1]
        flops += 2 * num_nodes * f_in * f_out                 # X @ W
        flops += 2 * num_nodes * num_nodes * f_out            # A_hat @ (XW)
        param_bytes += f_in * f_out * 2 + f_out * 4
        if with_ln and i != num_layers - 1:
            param_bytes += 2 * f_out * 4
    bytes_accessed = (num_nodes * num_nodes * 2                # A_hat (bf16)
                      + num_nodes * dims[0] * 2                # X (bf16)
                      + param_bytes
                      + num_nodes * num_class * 4)             # output (f32)
    cost = pl.CostEstimate(
        flops=flops,
        transcendentals=(num_layers - 1) * num_nodes if with_ln else 0,
        bytes_accessed=bytes_accessed)

    out = pl.pallas_call(
        kernel,
        out_shape=jax.ShapeDtypeStruct((n_pad, f_pad), jnp.float32),
        grid=(1,),
        in_specs=in_specs,
        out_specs=pl.BlockSpec((n_pad, f_pad), lambda i: (0, 0)),
        compiler_params=pltpu.CompilerParams(
            dimension_semantics=("arbitrary",)),
        cost_estimate=cost,
    )(*inputs)

    return out[:num_nodes, :num_class], None, None


# ------------------------------ Init / reference ---------------------------- #

def glorot(key, fan_in, fan_out):
    limit = jnp.sqrt(6.0 / (fan_in + fan_out))
    return jax.random.uniform(key, (fan_in, fan_out), jnp.float32, -limit, limit)


def init_gcn_params(key, num_feat, hidden, num_class, num_layers):
    dims = ([num_feat] + [hidden] * (num_layers - 1) + [num_class]
            if num_layers > 1 else [num_feat, num_class])
    params = []
    for i in range(num_layers):
        key, wk = jax.random.split(key)
        f_in, f_out = dims[i], dims[i + 1]
        params.append(dict(
            w=glorot(wk, f_in, f_out),                   # [F_in, F_out]
            b=jnp.zeros((1, f_out), jnp.float32),
            gamma=jnp.ones((1, f_out), jnp.float32),     # LayerNorm weight
            beta=jnp.zeros((1, f_out), jnp.float32),     # LayerNorm bias
        ))
    return params


def gcn_reference(params, x, a_hat, *, with_ln=True, eps=1e-6):
    """Pure-JAX f32 reference for validation (eval-mode semantics)."""
    h = x
    n_layers = len(params)
    for i, p in enumerate(params):
        last = i == n_layers - 1
        h = a_hat @ (h @ p["w"]) + p["b"]
        if not last:
            if with_ln:
                mean = jnp.mean(h, axis=-1, keepdims=True)
                var = jnp.mean(jnp.square(h - mean), axis=-1, keepdims=True)
                h = (h - mean) * jax.lax.rsqrt(var + eps)
                h = h * p["gamma"] + p["beta"]
            h = jnp.maximum(h, 0.0)
    return h


# --------------------------------- main ------------------------------------- #

if __name__ == "__main__":
    # args: num_feat=32, hidden_dimension=32, num_class=8, num_layers=2,
    #       dropout=0.5 (inactive in eval), with_ln=True
    N, NUM_FEAT, HIDDEN, NUM_CLASS, NUM_LAYERS, E = 64, 32, 32, 8, 2, 256

    key = jax.random.PRNGKey(0)
    kx, ke, kp = jax.random.split(key, 3)

    x = jax.random.normal(kx, (N, NUM_FEAT), jnp.float32)
    edge_index = jax.random.randint(ke, (2, E), 0, N, jnp.int32)

    params = init_gcn_params(kp, NUM_FEAT, HIDDEN, NUM_CLASS, NUM_LAYERS)

    # ---- one-time preprocessing (hoisted out of the per-call forward) ----
    prepped, dims, f_pad = prepare_gcn_params(params, with_ln=True)
    n_pad = _round_up(N, LANE)
    a_hat_p = gcn_norm_dense(edge_index, N, pad_to=n_pad, dtype=jnp.bfloat16)
    x_p = prepare_node_features(x, n_pad, f_pad)
    prepped = jax.block_until_ready(prepped)

    # ---- fused forward ----
    out, _, _ = gcn_forward(prepped, x_p, a_hat_p, num_nodes=N, dims=dims,
                            with_ln=True)
    out = jax.block_until_ready(out)

    assert out.shape == (N, NUM_CLASS) and out.dtype == jnp.float32

    # Validate bf16-MXU kernel against f32 reference (relaxed tolerance).
    a_hat_f32 = gcn_norm_dense(edge_index, N)
    ref = jax.block_until_ready(gcn_reference(params, x, a_hat_f32, with_ln=True))
    max_err = float(jnp.max(jnp.abs(out - ref)))
    assert jnp.all(jnp.isfinite(out)) and max_err < 1e-1, max_err

    print("KERNEL_OK")
</pallas_src>

<mosaic_0001>
module attributes {stable_mosaic.version = 11 : i64} {
  func.func @_fused_gcn_kernel(%arg0: i32, %arg1: memref<128x128xbf16, #tpu.memory_space<vmem>>, %arg2: memref<128x128xbf16, #tpu.memory_space<vmem>>, %arg3: memref<128x128xbf16, #tpu.memory_space<vmem>>, %arg4: memref<1x128xf32, #tpu.memory_space<vmem>>, %arg5: memref<1x128xf32, #tpu.memory_space<vmem>>, %arg6: memref<1x128xf32, #tpu.memory_space<vmem>>, %arg7: memref<128x128xbf16, #tpu.memory_space<vmem>>, %arg8: memref<1x128xf32, #tpu.memory_space<vmem>>, %arg9: memref<128x128xf32, #tpu.memory_space<vmem>>) attributes {dimension_semantics = [#tpu.dimension_semantics<arbitrary>], iteration_bounds = array<i64: 1>, scalar_prefetch = 0 : i64, scratch_operands = 0 : i64, tpu.core_type = #tpu.core_type<tc>, window_params = [{pipeline_mode = #tpu.pipeline_mode<synchronous>, transform_indices = @transform_0, window_bounds = array<i64: 128, 128>}, {pipeline_mode = #tpu.pipeline_mode<synchronous>, transform_indices = @transform_1, window_bounds = array<i64: 128, 128>}, {pipeline_mode = #tpu.pipeline_mode<synchronous>, transform_indices = @transform_2, window_bounds = array<i64: 128, 128>}, {pipeline_mode = #tpu.pipeline_mode<synchronous>, transform_indices = @transform_3, window_bounds = array<i64: 1, 128>}, {pipeline_mode = #tpu.pipeline_mode<synchronous>, transform_indices = @transform_4, window_bounds = array<i64: 1, 128>}, {pipeline_mode = #tpu.pipeline_mode<synchronous>, transform_indices = @transform_5, window_bounds = array<i64: 1, 128>}, {pipeline_mode = #tpu.pipeline_mode<synchronous>, transform_indices = @transform_6, window_bounds = array<i64: 128, 128>}, {pipeline_mode = #tpu.pipeline_mode<synchronous>, transform_indices = @transform_7, window_bounds = array<i64: 1, 128>}, {pipeline_mode = #tpu.pipeline_mode<synchronous>, transform_indices = @transform_8, window_bounds = array<i64: 128, 128>}]} {
    %c0 = arith.constant 0 : index
    %c0_0 = arith.constant 0 : index
    %0 = vector.load %arg1[%c0, %c0_0] : memref<128x128xbf16, #tpu.memory_space<vmem>>, vector<128x128xbf16>
    %c0_1 = arith.constant 0 : index
    %c0_2 = arith.constant 0 : index
    %1 = vector.load %arg2[%c0_1, %c0_2] : memref<128x128xbf16, #tpu.memory_space<vmem>>, vector<128x128xbf16>
    %2 = tpu.iota {dimensions = array<i32: 1>} : vector<1x128xi32>
    %c0_3 = arith.constant 0 : index
    %c0_4 = arith.constant 0 : index
    %3 = vector.load %arg3[%c0_3, %c0_4] : memref<128x128xbf16, #tpu.memory_space<vmem>>, vector<128x128xbf16>
    %cst = arith.constant dense<0.000000e+00> : vector<128x128xf32>
    %4 = tpu.matmul %1, %3, %cst {dimension_numbers = #tpu.dot_dimension_numbers<[1], [0], [0], [1], [0, 0, 1, 1], [], []>} : vector<128x128xbf16>, vector<128x128xbf16>, vector<128x128xf32> -> vector<128x128xf32>
    %5 = arith.truncf %4 : vector<128x128xf32> to vector<128x128xbf16>
    %cst_5 = arith.constant dense<0.000000e+00> : vector<128x128xf32>
    %6 = tpu.matmul %0, %5, %cst_5 {dimension_numbers = #tpu.dot_dimension_numbers<[1], [0], [0], [1], [0, 0, 1, 1], [], []>} : vector<128x128xbf16>, vector<128x128xbf16>, vector<128x128xf32> -> vector<128x128xf32>
    %c0_6 = arith.constant 0 : index
    %c0_7 = arith.constant 0 : index
    %7 = vector.load %arg4[%c0_6, %c0_7] : memref<1x128xf32, #tpu.memory_space<vmem>>, vector<1x128xf32>
    %8 = vector.broadcast %7 : vector<1x128xf32> to vector<128x128xf32>
    %9 = arith.addf %6, %8 : vector<128x128xf32>
    %c32_i32 = arith.constant 32 : i32
    %10 = vector.broadcast %c32_i32 : i32 to vector<1x128xi32>
    %11 = arith.cmpi slt, %2, %10 : vector<1x128xi32>
    %cst_8 = arith.constant 0.000000e+00 : f32
    %12 = vector.shape_cast %11 : vector<1x128xi1> to vector<1x128xi1>
    %13 = vector.broadcast %12 : vector<1x128xi1> to vector<128x128xi1>
    %14 = vector.broadcast %cst_8 : f32 to vector<128x128xf32>
    %15 = arith.select %13, %9, %14 : vector<128x128xi1>, vector<128x128xf32>
    %cst_9 = arith.constant dense<0.000000e+00> : vector<128xf32>
    %16 = vector.multi_reduction <add>, %15, %cst_9 [1] : vector<128x128xf32> to vector<128xf32>
    %17 = vector.shape_cast %16 : vector<128xf32> to vector<128x1xf32>
    %cst_10 = arith.constant 3.125000e-02 : f32
    %18 = vector.broadcast %cst_10 : f32 to vector<128x1xf32>
    %19 = arith.mulf %17, %18 : vector<128x1xf32>
    %20 = vector.broadcast %19 : vector<128x1xf32> to vector<128x128xf32>
    %21 = arith.subf %9, %20 : vector<128x128xf32>
    %cst_11 = arith.constant 0.000000e+00 : f32
    %22 = vector.shape_cast %11 : vector<1x128xi1> to vector<1x128xi1>
    %23 = vector.broadcast %22 : vector<1x128xi1> to vector<128x128xi1>
    %24 = vector.broadcast %cst_11 : f32 to vector<128x128xf32>
    %25 = arith.select %23, %21, %24 : vector<128x128xi1>, vector<128x128xf32>
    %26 = arith.mulf %25, %25 : vector<128x128xf32>
    %cst_12 = arith.constant dense<0.000000e+00> : vector<128xf32>
    %27 = vector.multi_reduction <add>, %26, %cst_12 [1] : vector<128x128xf32> to vector<128xf32>
    %28 = vector.shape_cast %27 : vector<128xf32> to vector<128x1xf32>
    %cst_13 = arith.constant 3.125000e-02 : f32
    %29 = vector.broadcast %cst_13 : f32 to vector<128x1xf32>
    %30 = arith.mulf %28, %29 : vector<128x1xf32>
    %cst_14 = arith.constant 9.99999997E-7 : f32
    %31 = vector.broadcast %cst_14 : f32 to vector<128x1xf32>
    %32 = arith.addf %30, %31 : vector<128x1xf32>
    %33 = math.rsqrt %32 : vector<128x1xf32>
    %34 = vector.broadcast %33 : vector<128x1xf32> to vector<128x128xf32>
    %35 = arith.mulf %25, %34 : vector<128x128xf32>
    %c0_15 = arith.constant 0 : index
    %c0_16 = arith.constant 0 : index
    %36 = vector.load %arg5[%c0_15, %c0_16] : memref<1x128xf32, #tpu.memory_space<vmem>>, vector<1x128xf32>
    %37 = vector.broadcast %36 : vector<1x128xf32> to vector<128x128xf32>
    %38 = arith.mulf %35, %37 : vector<128x128xf32>
    %c0_17 = arith.constant 0 : index
    %c0_18 = arith.constant 0 : index
    %39 = vector.load %arg6[%c0_17, %c0_18] : memref<1x128xf32, #tpu.memory_space<vmem>>, vector<1x128xf32>
    %40 = vector.broadcast %39 : vector<1x128xf32> to vector<128x128xf32>
    %41 = arith.addf %38, %40 : vector<128x128xf32>
    %cst_19 = arith.constant 0.000000e+00 : f32
    %42 = vector.broadcast %cst_19 : f32 to vector<128x128xf32>
    %43 = arith.maximumf %41, %42 : vector<128x128xf32>
    %44 = arith.truncf %43 : vector<128x128xf32> to vector<128x128xbf16>
    %c0_20 = arith.constant 0 : index
    %c0_21 = arith.constant 0 : index
    %45 = vector.load %arg7[%c0_20, %c0_21] : memref<128x128xbf16, #tpu.memory_space<vmem>>, vector<128x128xbf16>
    %cst_22 = arith.constant dense<0.000000e+00> : vector<128x128xf32>
    %46 = tpu.matmul %44, %45, %cst_22 {dimension_numbers = #tpu.dot_dimension_numbers<[1], [0], [0], [1], [0, 0, 1, 1], [], []>} : vector<128x128xbf16>, vector<128x128xbf16>, vector<128x128xf32> -> vector<128x128xf32>
    %47 = arith.truncf %46 : vector<128x128xf32> to vector<128x128xbf16>
    %cst_23 = arith.constant dense<0.000000e+00> : vector<128x128xf32>
    %48 = tpu.matmul %0, %47, %cst_23 {dimension_numbers = #tpu.dot_dimension_numbers<[1], [0], [0], [1], [0, 0, 1, 1], [], []>} : vector<128x128xbf16>, vector<128x128xbf16>, vector<128x128xf32> -> vector<128x128xf32>
    %c0_24 = arith.constant 0 : index
    %c0_25 = arith.constant 0 : index
    %49 = vector.load %arg8[%c0_24, %c0_25] : memref<1x128xf32, #tpu.memory_space<vmem>>, vector<1x128xf32>
    %50 = vector.broadcast %49 : vector<1x128xf32> to vector<128x128xf32>
    %51 = arith.addf %48, %50 : vector<128x128xf32>
    %c0_26 = arith.constant 0 : index
    %c0_27 = arith.constant 0 : index
    %52 = vector.load %arg9[%c0_26, %c0_27] : memref<128x128xf32, #tpu.memory_space<vmem>>, vector<128x128xf32>
    tpu.vector_store %arg9[%c0_26, %c0_27], %51 {strides = array<i32>} : memref<128x128xf32, #tpu.memory_space<vmem>>, vector<128x128xf32>,
    return
  }
  func.func @transform_0(%arg0: i32) -> (i32, i32) {
    %c0_i32 = arith.constant 0 : i32
    %c0_i32_0 = arith.constant 0 : i32
    %c0_i32_1 = arith.constant 0 : i32
    return %c0_i32, %c0_i32_0 : i32, i32
  }
  func.func @transform_1(%arg0: i32) -> (i32, i32) {
    %c0_i32 = arith.constant 0 : i32
    %c0_i32_0 = arith.constant 0 : i32
    %c0_i32_1 = arith.constant 0 : i32
    return %c0_i32, %c0_i32_0 : i32, i32
  }
  func.func @transform_2(%arg0: i32) -> (i32, i32) {
    %c0_i32 = arith.constant 0 : i32
    %c0_i32_0 = arith.constant 0 : i32
    %c0_i32_1 = arith.constant 0 : i32
    return %c0_i32, %c0_i32_0 : i32, i32
  }
  func.func @transform_3(%arg0: i32) -> (i32, i32) {
    %c0_i32 = arith.constant 0 : i32
    %c0_i32_0 = arith.constant 0 : i32
    %c0_i32_1 = arith.constant 0 : i32
    return %c0_i32, %c0_i32_0 : i32, i32
  }
  func.func @transform_4(%arg0: i32) -> (i32, i32) {
    %c0_i32 = arith.constant 0 : i32
    %c0_i32_0 = arith.constant 0 : i32
    %c0_i32_1 = arith.constant 0 : i32
    return %c0_i32, %c0_i32_0 : i32, i32
  }
  func.func @transform_5(%arg0: i32) -> (i32, i32) {
    %c0_i32 = arith.constant 0 : i32
    %c0_i32_0 = arith.constant 0 : i32
    %c0_i32_1 = arith.constant 0 : i32
    return %c0_i32, %c0_i32_0 : i32, i32
  }
  func.func @transform_6(%arg0: i32) -> (i32, i32) {
    %c0_i32 = arith.constant 0 : i32
    %c0_i32_0 = arith.constant 0 : i32
    %c0_i32_1 = arith.constant 0 : i32
    return %c0_i32, %c0_i32_0 : i32, i32
  }
  func.func @transform_7(%arg0: i32) -> (i32, i32) {
    %c0_i32 = arith.constant 0 : i32
    %c0_i32_0 = arith.constant 0 : i32
    %c0_i32_1 = arith.constant 0 : i32
    return %c0_i32, %c0_i32_0 : i32, i32
  }
  func.func @transform_8(%arg0: i32) -> (i32, i32) {
    %c0_i32 = arith.constant 0 : i32
    %c0_i32_0 = arith.constant 0 : i32
    %c0_i32_1 = arith.constant 0 : i32
    return %c0_i32, %c0_i32_0 : i32, i32
  }
}

</mosaic_0001>

<llo_original>
// kernel: gcn_forward.1
$region0: #{gcn_forward.1}
  #allocation0 [shape = 'u32[]', space=smem, size = 0x4, offset = 0x4, fixed_abs, tag = 'smem constant byte address 0x4 - core index']
  #allocation1 [shape = 'u32[144,128]{1,0:T(1,128)}', space=vmem, size = 0x12000, scoped, tag = 'internal scratch']
  %s0 = inlined_call_operand.hbm [shape: bf16[128,128], index: 0, kind: input, shape index: {}]
  %s1 = inlined_call_operand.hbm [shape: bf16[128,128], index: 1, kind: input, shape index: {}]
  %s2 = inlined_call_operand.hbm [shape: bf16[128,128], index: 2, kind: input, shape index: {}]
  %s3 = inlined_call_operand.hbm [shape: f32[1,128], index: 3, kind: input, shape index: {}]
  %s4 = inlined_call_operand.vmem [shape: f32[1,128], index: 4, kind: input, shape index: {}]
  %s5 = inlined_call_operand.vmem [shape: f32[1,128], index: 5, kind: input, shape index: {}]
  %s6 = inlined_call_operand.hbm [shape: bf16[128,128], index: 6, kind: input, shape index: {}]
  %s7 = inlined_call_operand.vmem [shape: f32[1,128], index: 7, kind: input, shape index: {}]
  %s8 = inlined_call_operand.vmem [shape: f32[128,128], index: 8, kind: output, shape index: {}]
  %s9 = sld [smem:[#allocation0]]
  $region62: #{gcn_forward.1} parent=0
    _
  %s11 = ssub.s32 1, %s9
  %s12 = scalar_select 0, %s11, %s9
  $region1: #{gcn_forward.1} parent=0
    #allocation2 [shape = 'u8[32768]{0}', space=vmem, size = 0x8000, scoped, tag = 'input window, operand 0, single buffered']
    #allocation3 [shape = 's32[1]{0}', space=sflag, size = 0x4, scoped, tag = 'scoped memory for gcn_forward.1']
    #allocation4 [shape = 'u8[32768]{0}', space=vmem, size = 0x8000, scoped, tag = 'input window, operand 1, single buffered']
    #allocation5 [shape = 's32[1]{0}', space=sflag, size = 0x4, scoped, tag = 'scoped memory for gcn_forward.1']
    #allocation6 [shape = 'u8[32768]{0}', space=vmem, size = 0x8000, scoped, tag = 'input window, operand 2, single buffered']
    #allocation7 [shape = 'u8[512]{0}', space=vmem, size = 0x400, scoped, tag = 'input window, operand 3, single buffered']
    #allocation8 [shape = 's32[1]{0}', space=sflag, size = 0x4, scoped, tag = 'scoped memory for gcn_forward.1']
    #allocation9 [shape = 'u8[32768]{0}', space=vmem, size = 0x8000, scoped, tag = 'input window, operand 6, single buffered']
    %13 = vsyncpa [#allocation3], 0
    %14 = vsyncpa [#allocation5], 0
    %15 = vsyncpa [#allocation8], 0
    // Predicated region
    $region2: #{gcn_forward.1} parent=1 // pred_check
      _
    $region3: #{gcn_forward.1} parent=1 // pred_check_branch
      %17 = sbr.rel (0) target = $region5
    $region4: #{gcn_forward.1} parent=1 // pred_region
      %s19 = ssub.s32 1024, 1024
      %20 = vsyncadd [#allocation3], %s19
      %s21 = sshll.u32 [#allocation2], 4
      %s22 = int_to_ptr.vmem [resolvable:$true] %s21
      %27 = dma.hbm_to_vmem [thread:$0]  %s0, 1024, %s22, [#allocation3], 64, 64, 4
    $region5: #{gcn_forward.1} parent=1 // pred_fallthru
      _
    // Predicated region
    $region6: #{gcn_forward.1} parent=1 // pred_check
      _
    $region7: #{gcn_forward.1} parent=1 // pred_check_branch
      %29 = sbr.rel (0) target = $region9
    $region8: #{gcn_forward.1} parent=1 // pred_region
      %s31 = ssub.s32 1024, 1024
      %32 = vsyncadd [#allocation5], %s31
      %s33 = sshll.u32 [#allocation4], 4
      %s34 = int_to_ptr.vmem [resolvable:$true] %s33
      %39 = dma.hbm_to_vmem [thread:$0]  %s1, 1024, %s34, [#allocation5], 64, 64, 4
    $region9: #{gcn_forward.1} parent=1 // pred_fallthru
      _
    // Predicated region
    $region10: #{gcn_forward.1} parent=1 // pred_check
      _
    $region11: #{gcn_forward.1} parent=1 // pred_check_branch
      %41 = sbr.rel (0) target = $region13
    $region12: #{gcn_forward.1} parent=1 // pred_region
      %s43 = ssub.s32 1024, 1024
      %44 = vsyncadd [#allocation5], %s43
      %s45 = sshll.u32 [#allocation6], 4
      %s46 = int_to_ptr.vmem [resolvable:$true] %s45
      %51 = dma.hbm_to_vmem [thread:$0]  %s2, 1024, %s46, [#allocation5], 64, 64, 4
    $region13: #{gcn_forward.1} parent=1 // pred_fallthru
      _
    // Predicated region
    $region14: #{gcn_forward.1} parent=1 // pred_check
      _
    $region15: #{gcn_forward.1} parent=1 // pred_check_branch
      %53 = sbr.rel (0) target = $region17
    $region16: #{gcn_forward.1} parent=1 // pred_region
      %s55 = ssub.s32 16, 16
      %56 = vsyncadd [#allocation8], %s55
      %s58 = sshll.u32 [#allocation7], 4
      %s59 = int_to_ptr.vmem [resolvable:$true] %s58
      %61 = dma.hbm_to_vmem [thread:$0]  %s3, 16, %s59, [#allocation8]
    $region17: #{gcn_forward.1} parent=1 // pred_fallthru
      _
    // Predicated region
    $region18: #{gcn_forward.1} parent=1 // pred_check
      _
    $region19: #{gcn_forward.1} parent=1 // pred_check_branch
      %63 = sbr.rel (0) target = $region21
    $region20: #{gcn_forward.1} parent=1 // pred_region
      _
    $region21: #{gcn_forward.1} parent=1 // pred_fallthru
      _
    // Predicated region
    $region22: #{gcn_forward.1} parent=1 // pred_check
      _
    $region23: #{gcn_forward.1} parent=1 // pred_check_branch
      %65 = sbr.rel (0) target = $region25
    $region24: #{gcn_forward.1} parent=1 // pred_region
      _
    $region25: #{gcn_forward.1} parent=1 // pred_fallthru
      _
    // Predicated region
    $region26: #{gcn_forward.1} parent=1 // pred_check
      _
    $region27: #{gcn_forward.1} parent=1 // pred_check_branch
      %67 = sbr.rel (0) target = $region29
    $region28: #{gcn_forward.1} parent=1 // pred_region
      %s69 = ssub.s32 1024, 1024
      %70 = vsyncadd [#allocation8], %s69
      %s71 = sshll.u32 [#allocation9], 4
      %s72 = int_to_ptr.vmem [resolvable:$true] %s71
      %77 = dma.hbm_to_vmem [thread:$0]  %s6, 1024, %s72, [#allocation8], 64, 64, 4
    $region29: #{gcn_forward.1} parent=1 // pred_fallthru
      _
    // Predicated region
    $region30: #{gcn_forward.1} parent=1 // pred_check
      _
    $region31: #{gcn_forward.1} parent=1 // pred_check_branch
      %79 = sbr.rel (0) target = $region33
    $region32: #{gcn_forward.1} parent=1 // pred_region
      _
    $region33: #{gcn_forward.1} parent=1 // pred_fallthru
      _
    // Predicated region
    $region34: #{gcn_forward.1} parent=1 // pred_check
      _
    $region35: #{gcn_forward.1} parent=1 // pred_check_branch
      %81 = sbr.rel (0) target = $region37
    $region36: #{gcn_forward.1} parent=1 // pred_region
      %82 = dma.done [#allocation3], 1024
    $region37: #{gcn_forward.1} parent=1 // pred_fallthru
      _
    // Predicated region
    $region38: #{gcn_forward.1} parent=1 // pred_check
      _
    $region39: #{gcn_forward.1} parent=1 // pred_check_branch
      %84 = sbr.rel (0) target = $region41
    $region40: #{gcn_forward.1} parent=1 // pred_region
      %85 = dma.done [#allocation5], 1024
    $region41: #{gcn_forward.1} parent=1 // pred_fallthru
      _
    // Predicated region
    $region42: #{gcn_forward.1} parent=1 // pred_check
      _
    $region43: #{gcn_forward.1} parent=1 // pred_check_branch
      %87 = sbr.rel (0) target = $region45
    $region44: #{gcn_forward.1} parent=1 // pred_region
      %88 = dma.done [#allocation5], 1024
    $region45: #{gcn_forward.1} parent=1 // pred_fallthru
      _
    // Predicated region
    $region46: #{gcn_forward.1} parent=1 // pred_check
      _
    $region47: #{gcn_forward.1} parent=1 // pred_check_branch
      %90 = sbr.rel (0) target = $region49
    $region48: #{gcn_forward.1} parent=1 // pred_region
      %91 = dma.done [#allocation8], 16
    $region49: #{gcn_forward.1} parent=1 // pred_fallthru
      _
    // Predicated region
    $region50: #{gcn_forward.1} parent=1 // pred_check
      _
    $region51: #{gcn_forward.1} parent=1 // pred_check_branch
      %93 = sbr.rel (0) target = $region53
    $region52: #{gcn_forward.1} parent=1 // pred_region
      %94 = dma.done [#allocation8], 1024
    $region53: #{gcn_forward.1} parent=1 // pred_fallthru
      _
    %v96 = vld [vmem:[#allocation2] sm:$0xf]
    %v97 = vld [vmem:[#allocation2 + $0x4] sm:$0xf]
    %v98 = vld [vmem:[#allocation2 + $0x8] sm:$0xf]
    %v99 = vld [vmem:[#allocation2 + $0xc] sm:$0xf]
    %v100 = vld [vmem:[#allocation2 + $0x10] sm:$0xf]
    %v101 = vld [vmem:[#allocation2 + $0x14] sm:$0xf]
    %v102 = vld [vmem:[#allocation2 + $0x18] sm:$0xf]
    %v103 = vld [vmem:[#allocation2 + $0x1c] sm:$0xf]
    %v104 = vld [vmem:[#allocation2 + $0x20] sm:$0xf]
    %v105 = vld [vmem:[#allocation2 + $0x24] sm:$0xf]
    %v106 = vld [vmem:[#allocation2 + $0x28] sm:$0xf]
    %v107 = vld [vmem:[#allocation2 + $0x2c] sm:$0xf]
    %v108 = vld [vmem:[#allocation2 + $0x30] sm:$0xf]
    %v109 = vld [vmem:[#allocation2 + $0x34] sm:$0xf]
    %v110 = vld [vmem:[#allocation2 + $0x38] sm:$0xf]
    %v111 = vld [vmem:[#allocation2 + $0x3c] sm:$0xf]
    %v112 = vld [vmem:[#allocation4] sm:$0xf]
    %v113 = vld [vmem:[#allocation4 + $0x4] sm:$0xf]
    %v114 = vld [vmem:[#allocation4 + $0x8] sm:$0xf]
    %v115 = vld [vmem:[#allocation4 + $0xc] sm:$0xf]
    %v116 = vld [vmem:[#allocation4 + $0x10] sm:$0xf]
    %v117 = vld [vmem:[#allocation4 + $0x14] sm:$0xf]
    %v118 = vld [vmem:[#allocation4 + $0x18] sm:$0xf]
    %v119 = vld [vmem:[#allocation4 + $0x1c] sm:$0xf]
    %v120 = vld [vmem:[#allocation4 + $0x20] sm:$0xf]
    %v121 = vld [vmem:[#allocation4 + $0x24] sm:$0xf]
    %v122 = vld [vmem:[#allocation4 + $0x28] sm:$0xf]
    %v123 = vld [vmem:[#allocation4 + $0x2c] sm:$0xf]
    %v124 = vld [vmem:[#allocation4 + $0x30] sm:$0xf]
    %v125 = vld [vmem:[#allocation4 + $0x34] sm:$0xf]
    %v126 = vld [vmem:[#allocation4 + $0x38] sm:$0xf]
    %v127 = vld [vmem:[#allocation4 + $0x3c] sm:$0xf]
    %v128 = vlaneseq
    %v129 = vand.u32 %v128, 127
    %v130 = vld [vmem:[#allocation6] sm:$0xf]
    %v131 = vld [vmem:[#allocation6 + $0x4] sm:$0xf]
    %v132 = vld [vmem:[#allocation6 + $0x8] sm:$0xf]
    %v133 = vld [vmem:[#allocation6 + $0xc] sm:$0xf]
    %v134 = vld [vmem:[#allocation6 + $0x10] sm:$0xf]
    %v135 = vld [vmem:[#allocation6 + $0x14] sm:$0xf]
    %v136 = vld [vmem:[#allocation6 + $0x18] sm:$0xf]
    %v137 = vld [vmem:[#allocation6 + $0x1c] sm:$0xf]
    %v138 = vld [vmem:[#allocation6 + $0x20] sm:$0xf]
    %v139 = vld [vmem:[#allocation6 + $0x24] sm:$0xf]
    %v140 = vld [vmem:[#allocation6 + $0x28] sm:$0xf]
    %v141 = vld [vmem:[#allocation6 + $0x2c] sm:$0xf]
    %v142 = vld [vmem:[#allocation6 + $0x30] sm:$0xf]
    %v143 = vld [vmem:[#allocation6 + $0x34] sm:$0xf]
    %v144 = vld [vmem:[#allocation6 + $0x38] sm:$0xf]
    %v145 = vld [vmem:[#allocation6 + $0x3c] sm:$0xf]
    %v162 = vunpack.c.l.b16 %v112
    %v163 = vunpack.c.l.b16 %v113
    %v164 = vunpack.c.l.b16 %v114
    %v165 = vunpack.c.l.b16 %v115
    %v166 = vunpack.c.l.b16 %v116
    %v167 = vunpack.c.l.b16 %v117
    %v168 = vunpack.c.l.b16 %v118
    %v169 = vunpack.c.l.b16 %v119
    %v170 = vunpack.c.l.b16 %v120
    %v171 = vunpack.c.l.b16 %v121
    %v172 = vunpack.c.l.b16 %v122
    %v173 = vunpack.c.l.b16 %v123
    %v174 = vunpack.c.l.b16 %v124
    %v175 = vunpack.c.l.b16 %v125
    %v176 = vunpack.c.l.b16 %v126
    %v177 = vunpack.c.l.b16 %v127
    %v178 = vpack.c.b16 %v163, %v162
    %v179 = vpack.c.b16 %v165, %v164
    %v180 = vpack.c.b16 %v167, %v166
    %v181 = vpack.c.b16 %v169, %v168
    %v182 = vpack.c.b16 %v171, %v170
    %v183 = vpack.c.b16 %v173, %v172
    %v184 = vpack.c.b16 %v175, %v174
    %v185 = vpack.c.b16 %v177, %v176
    %v210 = vunpack.c.l.b16 %v130
    %v211 = vunpack.c.l.b16 %v131
    %v212 = vunpack.c.l.b16 %v132
    %v213 = vunpack.c.l.b16 %v133
    %v214 = vunpack.c.l.b16 %v134
    %v215 = vunpack.c.l.b16 %v135
    %v216 = vunpack.c.l.b16 %v136
    %v217 = vunpack.c.l.b16 %v137
    %v218 = vunpack.c.l.b16 %v138
    %v219 = vunpack.c.l.b16 %v139
    %v220 = vunpack.c.l.b16 %v140
    %v221 = vunpack.c.l.b16 %v141
    %v222 = vunpack.c.l.b16 %v142
    %v223 = vunpack.c.l.b16 %v143
    %v224 = vunpack.c.l.b16 %v144
    %v225 = vunpack.c.l.b16 %v145
    %v226 = vpack.c.b16 %v211, %v210
    %v227 = vpack.c.b16 %v213, %v212
    %v228 = vpack.c.b16 %v215, %v214
    %v229 = vpack.c.b16 %v217, %v216
    %v230 = vpack.c.b16 %v219, %v218
    %v231 = vpack.c.b16 %v221, %v220
    %v232 = vpack.c.b16 %v223, %v222
    %v233 = vpack.c.b16 %v225, %v224
    %242 = vmatprep.subr.bf16.mxu0 0
    %243 = vmatpush1.bf16.msra.mxu0 %v226
    %244 = vmatprep.subr.bf16.mxu0 0
    %245 = vmatpush1.bf16.msra.mxu0 %v227
    %246 = vmatprep.subr.bf16.mxu0 0
    %247 = vmatpush1.bf16.msra.mxu0 %v228
    %248 = vmatprep.subr.bf16.mxu0 0
    %249 = vmatpush1.bf16.msra.mxu0 %v229
    %250 = vmatprep.subr.bf16.mxu0 0
    %251 = vmatpush1.bf16.msra.mxu0 %v230
    %252 = vmatprep.subr.bf16.mxu0 0
    %253 = vmatpush1.bf16.msra.mxu0 %v231
    %254 = vmatprep.subr.bf16.mxu0 0
    %255 = vmatpush1.bf16.msra.mxu0 %v232
    %256 = vmatprep.subr.bf16.mxu0 0
    %257 = vmatpush1.bf16.msra.mxu0 %v233
    %258 = vmatprep.subr.bf16.mxu0 0
    %259 = vmatpush1.bf16.msra.mxu0 0
    %260 = vmatprep.subr.bf16.mxu0 0
    %261 = vmatpush1.bf16.msra.mxu0 0
    %262 = vmatprep.subr.bf16.mxu0 0
    %263 = vmatpush1.bf16.msra.mxu0 0
    %264 = vmatprep.subr.bf16.mxu0 0
    %265 = vmatpush1.bf16.msra.mxu0 0
    %266 = vmatprep.subr.bf16.mxu0 0
    %267 = vmatpush1.bf16.msra.mxu0 0
    %268 = vmatprep.subr.bf16.mxu0 0
    %269 = vmatpush1.bf16.msra.mxu0 0
    %270 = vmatprep.subr.bf16.mxu0 0
    %271 = vmatpush1.bf16.msra.mxu0 0
    %272 = vmatprep.subr.bf16.mxu0 0
    %273 = vmatpush1.bf16.msra.mxu0 0
    %274 = vmatprep.mubr.bf16.mxu0 0
    %275 = vmatmul.mubr.bf16.gmra.mrb[0].mxu0 %v178
    %v276 = vpop.f32.mrb[0].mxu0
    %v277 = vadd.f32 0.0, %v276
    %v278 = vpop.f32.mrb[0].mxu0
    %v279 = vpop.f32.mrb[0].mxu0
    %v280 = vadd.f32 0.0, %v279
    %v281 = vpop.f32.mrb[0].mxu0
    %282 = vmatprep.mubr.bf16.mxu0 0
    %283 = vmatmul.mubr.bf16.gmra.mrb[0].mxu0 %v179
    %v284 = vpop.f32.mrb[0].mxu0
    %v285 = vadd.f32 0.0, %v284
    %v286 = vpop.f32.mrb[0].mxu0
    %v287 = vpop.f32.mrb[0].mxu0
    %v288 = vadd.f32 0.0, %v287
    %v289 = vpop.f32.mrb[0].mxu0
    %290 = vmatprep.mubr.bf16.mxu0 0
    %291 = vmatmul.mubr.bf16.gmra.mrb[0].mxu0 %v180
    %v292 = vpop.f32.mrb[0].mxu0
    %v293 = vadd.f32 0.0, %v292
    %v294 = vpop.f32.mrb[0].mxu0
    %v295 = vpop.f32.mrb[0].mxu0
    %v296 = vadd.f32 0.0, %v295
    %v297 = vpop.f32.mrb[0].mxu0
    %298 = vmatprep.mubr.bf16.mxu0 0
    %299 = vmatmul.mubr.bf16.gmra.mrb[0].mxu0 %v181
    %v300 = vpop.f32.mrb[0].mxu0
    %v301 = vadd.f32 0.0, %v300
    %v302 = vpop.f32.mrb[0].mxu0
    %v303 = vpop.f32.mrb[0].mxu0
    %v304 = vadd.f32 0.0, %v303
    %v305 = vpop.f32.mrb[0].mxu0
    %306 = vmatprep.mubr.bf16.mxu0 0
    %307 = vmatmul.mubr.bf16.gmra.mrb[0].mxu0 %v182
    %v308 = vpop.f32.mrb[0].mxu0
    %v309 = vadd.f32 0.0, %v308
    %v310 = vpop.f32.mrb[0].mxu0
    %v311 = vpop.f32.mrb[0].mxu0
    %v312 = vadd.f32 0.0, %v311
    %v313 = vpop.f32.mrb[0].mxu0
    %314 = vmatprep.mubr.bf16.mxu0 0
    %315 = vmatmul.mubr.bf16.gmra.mrb[0].mxu0 %v183
    %v316 = vpop.f32.mrb[0].mxu0
    %v317 = vadd.f32 0.0, %v316
    %v318 = vpop.f32.mrb[0].mxu0
    %v319 = vpop.f32.mrb[0].mxu0
    %v320 = vadd.f32 0.0, %v319
    %v321 = vpop.f32.mrb[0].mxu0
    %322 = vmatprep.mubr.bf16.mxu0 0
    %323 = vmatmul.mubr.bf16.gmra.mrb[0].mxu0 %v184
    %v324 = vpop.f32.mrb[0].mxu0
    %v325 = vadd.f32 0.0, %v324
    %v326 = vpop.f32.mrb[0].mxu0
    %v327 = vpop.f32.mrb[0].mxu0
    %v328 = vadd.f32 0.0, %v327
    %v329 = vpop.f32.mrb[0].mxu0
    %330 = vmatprep.mubr.bf16.mxu0 0
    %331 = vmatmul.mubr.bf16.gmra.mrb[0].mxu0 %v185
    %v332 = vpop.f32.mrb[0].mxu0
    %v333 = vadd.f32 0.0, %v332
    %v334 = vpop.f32.mrb[0].mxu0
    %v335 = vpop.f32.mrb[0].mxu0
    %v336 = vadd.f32 0.0, %v335
    %v337 = vpop.f32.mrb[0].mxu0
    %338 = vdwg.mxu0
    %v339 = vpack.c.bf16 %v280, %v277
    %v340 = vpack.c.bf16 %v288, %v285
    %v341 = vpack.c.bf16 %v296, %v293
    %v342 = vpack.c.bf16 %v304, %v301
    %v343 = vpack.c.bf16 %v312, %v309
    %v344 = vpack.c.bf16 %v320, %v317
    %v345 = vpack.c.bf16 %v328, %v325
    %v346 = vpack.c.bf16 %v336, %v333
    %v347 = vld [vmem:[#allocation7] sm:$0x1]
    %v349 = vlaneseq
    %v350 = vshrl.u32 %v349, 7
    %v351 = vsub.s32 0, %v350
    %v352 = vrot.slane %v347, %v351
    %v370 = vunpack.c.l.b16 %v96
    %v371 = vunpack.c.l.b16 %v97
    %v372 = vunpack.c.l.b16 %v98
    %v373 = vunpack.c.l.b16 %v99
    %v374 = vunpack.c.l.b16 %v100
    %v375 = vunpack.c.l.b16 %v101
    %v376 = vunpack.c.l.b16 %v102
    %v377 = vunpack.c.l.b16 %v103
    %v378 = vunpack.c.l.b16 %v104
    %v379 = vunpack.c.l.b16 %v105
    %v380 = vunpack.c.l.b16 %v106
    %v381 = vunpack.c.l.b16 %v107
    %v382 = vunpack.c.l.b16 %v108
    %v383 = vunpack.c.l.b16 %v109
    %v384 = vunpack.c.l.b16 %v110
    %v385 = vunpack.c.l.b16 %v111
    %v386 = vpack.c.b16 %v371, %v370
    %v387 = vpack.c.b16 %v373, %v372
    %v388 = vpack.c.b16 %v375, %v374
    %v389 = vpack.c.b16 %v377, %v376
    %v390 = vpack.c.b16 %v379, %v378
    %v391 = vpack.c.b16 %v381, %v380
    %v392 = vpack.c.b16 %v383, %v382
    %v393 = vpack.c.b16 %v385, %v384
    %402 = vmatprep.subr.bf16.mxu0 0
    %403 = vmatpush1.bf16.msra.mxu0 %v339
    %404 = vmatprep.subr.bf16.mxu0 0
    %405 = vmatpush1.bf16.msra.mxu0 %v340
    %406 = vmatprep.subr.bf16.mxu0 0
    %407 = vmatpush1.bf16.msra.mxu0 %v341
    %408 = vmatprep.subr.bf16.mxu0 0
    %409 = vmatpush1.bf16.msra.mxu0 %v342
    %410 = vmatprep.subr.bf16.mxu0 0
    %411 = vmatpush1.bf16.msra.mxu0 %v343
    %412 = vmatprep.subr.bf16.mxu0 0
    %413 = vmatpush1.bf16.msra.mxu0 %v344
    %414 = vmatprep.subr.bf16.mxu0 0
    %415 = vmatpush1.bf16.msra.mxu0 %v345
    %416 = vmatprep.subr.bf16.mxu0 0
    %417 = vmatpush1.bf16.msra.mxu0 %v346
    %418 = vmatprep.subr.bf16.mxu0 0
    %419 = vmatpush1.bf16.msra.mxu0 0
    %420 = vmatprep.subr.bf16.mxu0 0
    %421 = vmatpush1.bf16.msra.mxu0 0
    %422 = vmatprep.subr.bf16.mxu0 0
    %423 = vmatpush1.bf16.msra.mxu0 0
    %424 = vmatprep.subr.bf16.mxu0 0
    %425 = vmatpush1.bf16.msra.mxu0 0
    %426 = vmatprep.subr.bf16.mxu0 0
    %427 = vmatpush1.bf16.msra.mxu0 0
    %428 = vmatprep.subr.bf16.mxu0 0
    %429 = vmatpush1.bf16.msra.mxu0 0
    %430 = vmatprep.subr.bf16.mxu0 0
    %431 = vmatpush1.bf16.msra.mxu0 0
    %432 = vmatprep.subr.bf16.mxu0 0
    %433 = vmatpush1.bf16.msra.mxu0 0
    %434 = vmatprep.mubr.bf16.mxu0 0
    %435 = vmatmul.mubr.bf16.gmra.mrb[0].mxu0 %v386
    %v436 = vpop.f32.mrb[0].mxu0
    %v437 = vadd.f32 %v352, %v436
    %v438 = vpop.f32.mrb[0].mxu0
    %v439 = vpop.f32.mrb[0].mxu0
    %v440 = vadd.f32 %v352, %v439
    %v441 = vpop.f32.mrb[0].mxu0
    %442 = vmatprep.mubr.bf16.mxu0 0
    %443 = vmatmul.mubr.bf16.gmra.mrb[0].mxu0 %v387
    %v444 = vpop.f32.mrb[0].mxu0
    %v445 = vadd.f32 %v352, %v444
    %v446 = vpop.f32.mrb[0].mxu0
    %v447 = vpop.f32.mrb[0].mxu0
    %v448 = vadd.f32 %v352, %v447
    %v449 = vpop.f32.mrb[0].mxu0
    %450 = vmatprep.mubr.bf16.mxu0 0
    %451 = vmatmul.mubr.bf16.gmra.mrb[0].mxu0 %v388
    %v452 = vpop.f32.mrb[0].mxu0
    %v453 = vadd.f32 %v352, %v452
    %v454 = vpop.f32.mrb[0].mxu0
    %v455 = vpop.f32.mrb[0].mxu0
    %v456 = vadd.f32 %v352, %v455
    %v457 = vpop.f32.mrb[0].mxu0
    %458 = vmatprep.mubr.bf16.mxu0 0
    %459 = vmatmul.mubr.bf16.gmra.mrb[0].mxu0 %v389
    %v460 = vpop.f32.mrb[0].mxu0
    %v461 = vadd.f32 %v352, %v460
    %v462 = vpop.f32.mrb[0].mxu0
    %v463 = vpop.f32.mrb[0].mxu0
    %v464 = vadd.f32 %v352, %v463
    %v465 = vpop.f32.mrb[0].mxu0
    %466 = vmatprep.mubr.bf16.mxu0 0
    %467 = vmatmul.mubr.bf16.gmra.mrb[0].mxu0 %v390
    %v468 = vpop.f32.mrb[0].mxu0
    %v469 = vadd.f32 %v352, %v468
    %v470 = vpop.f32.mrb[0].mxu0
    %v471 = vpop.f32.mrb[0].mxu0
    %v472 = vadd.f32 %v352, %v471
    %v473 = vpop.f32.mrb[0].mxu0
    %474 = vmatprep.mubr.bf16.mxu0 0
    %475 = vmatmul.mubr.bf16.gmra.mrb[0].mxu0 %v391
    %v476 = vpop.f32.mrb[0].mxu0
    %v477 = vadd.f32 %v352, %v476
    %v478 = vpop.f32.mrb[0].mxu0
    %v479 = vpop.f32.mrb[0].mxu0
    %v480 = vadd.f32 %v352, %v479
    %v481 = vpop.f32.mrb[0].mxu0
    %482 = vmatprep.mubr.bf16.mxu0 0
    %483 = vmatmul.mubr.bf16.gmra.mrb[0].mxu0 %v392
    %v484 = vpop.f32.mrb[0].mxu0
    %v485 = vadd.f32 %v352, %v484
    %v486 = vpop.f32.mrb[0].mxu0
    %v487 = vpop.f32.mrb[0].mxu0
    %v488 = vadd.f32 %v352, %v487
    %v489 = vpop.f32.mrb[0].mxu0
    %490 = vmatprep.mubr.bf16.mxu0 0
    %491 = vmatmul.mubr.bf16.gmra.mrb[0].mxu0 %v393
    %v492 = vpop.f32.mrb[0].mxu0
    %v493 = vadd.f32 %v352, %v492
    %v494 = vpop.f32.mrb[0].mxu0
    %v495 = vpop.f32.mrb[0].mxu0
    %v496 = vadd.f32 %v352, %v495
    %v497 = vpop.f32.mrb[0].mxu0
    %498 = vdwg.mxu0
    %vm499 = vcmp.lt.s32.totalorder %v129, 32
    %v500 = vsel %vm499, 1, 0
    %vm501 = vcmp.eq.s32.totalorder %v500, 1
    %v502 = vsel %vm501, %v437, 0.0
    %v503 = vsel %vm501, %v440, 0.0
    %v504 = vsel %vm501, %v445, 0.0
    %v505 = vsel %vm501, %v448, 0.0
    %v506 = vsel %vm501, %v453, 0.0
    %v507 = vsel %vm501, %v456, 0.0
    %v508 = vsel %vm501, %v461, 0.0
    %v509 = vsel %vm501, %v464, 0.0
    %v510 = vsel %vm501, %v469, 0.0
    %v511 = vsel %vm501, %v472, 0.0
    %v512 = vsel %vm501, %v477, 0.0
    %v513 = vsel %vm501, %v480, 0.0
    %v514 = vsel %vm501, %v485, 0.0
    %v515 = vsel %vm501, %v488, 0.0
    %v516 = vsel %vm501, %v493, 0.0
    %v517 = vsel %vm501, %v496, 0.0
    %518 = vadd.xlane.f32.xlu0 %v502
    %v519 = vpop.xlane.xlu0 %518
    %520 = vadd.xlane.f32.xlu0 %v503
    %v521 = vpop.xlane.xlu0 %520
    %522 = vadd.xlane.f32.xlu0 %v504
    %v523 = vpop.xlane.xlu0 %522
    %524 = vadd.xlane.f32.xlu0 %v505
    %v525 = vpop.xlane.xlu0 %524
    %526 = vadd.xlane.f32.xlu0 %v506
    %v527 = vpop.xlane.xlu0 %526
    %528 = vadd.xlane.f32.xlu0 %v507
    %v529 = vpop.xlane.xlu0 %528
    %530 = vadd.xlane.f32.xlu0 %v508
    %v531 = vpop.xlane.xlu0 %530
    %532 = vadd.xlane.f32.xlu0 %v509
    %v533 = vpop.xlane.xlu0 %532
    %534 = vadd.xlane.f32.xlu0 %v510
    %v535 = vpop.xlane.xlu0 %534
    %536 = vadd.xlane.f32.xlu0 %v511
    %v537 = vpop.xlane.xlu0 %536
    %538 = vadd.xlane.f32.xlu0 %v512
    %v539 = vpop.xlane.xlu0 %538
    %540 = vadd.xlane.f32.xlu0 %v513
    %v541 = vpop.xlane.xlu0 %540
    %542 = vadd.xlane.f32.xlu0 %v514
    %v543 = vpop.xlane.xlu0 %542
    %544 = vadd.xlane.f32.xlu0 %v515
    %v545 = vpop.xlane.xlu0 %544
    %546 = vadd.xlane.f32.xlu0 %v516
    %v547 = vpop.xlane.xlu0 %546
    %548 = vadd.xlane.f32.xlu0 %v517
    %v549 = vpop.xlane.xlu0 %548
    %v550 = vmul.f32 %v519, 0.03125
    %v551 = vmul.f32 %v521, 0.03125
    %v552 = vmul.f32 %v523, 0.03125
    %v553 = vmul.f32 %v525, 0.03125
    %v554 = vmul.f32 %v527, 0.03125
    %v555 = vmul.f32 %v529, 0.03125
    %v556 = vmul.f32 %v531, 0.03125
    %v557 = vmul.f32 %v533, 0.03125
    %v558 = vmul.f32 %v535, 0.03125
    %v559 = vmul.f32 %v537, 0.03125
    %v560 = vmul.f32 %v539, 0.03125
    %v561 = vmul.f32 %v541, 0.03125
    %v562 = vmul.f32 %v543, 0.03125
    %v563 = vmul.f32 %v545, 0.03125
    %v564 = vmul.f32 %v547, 0.03125
    %v565 = vmul.f32 %v549, 0.03125
    %v566 = vsub.f32 %v437, %v550
    %v567 = vsub.f32 %v440, %v551
    %v568 = vsub.f32 %v445, %v552
    %v569 = vsub.f32 %v448, %v553
    %v570 = vsub.f32 %v453, %v554
    %v571 = vsub.f32 %v456, %v555
    %v572 = vsub.f32 %v461, %v556
    %v573 = vsub.f32 %v464, %v557
    %v574 = vsub.f32 %v469, %v558
    %v575 = vsub.f32 %v472, %v559
    %v576 = vsub.f32 %v477, %v560
    %v577 = vsub.f32 %v480, %v561
    %v578 = vsub.f32 %v485, %v562
    %v579 = vsub.f32 %v488, %v563
    %v580 = vsub.f32 %v493, %v564
    %v581 = vsub.f32 %v496, %v565
    %v582 = vsel %vm501, %v566, 0.0
    %v583 = vsel %vm501, %v567, 0.0
    %v584 = vsel %vm501, %v568, 0.0
    %v585 = vsel %vm501, %v569, 0.0
    %v586 = vsel %vm501, %v570, 0.0
    %v587 = vsel %vm501, %v571, 0.0
    %v588 = vsel %vm501, %v572, 0.0
    %v589 = vsel %vm501, %v573, 0.0
    %v590 = vsel %vm501, %v574, 0.0
    %v591 = vsel %vm501, %v575, 0.0
    %v592 = vsel %vm501, %v576, 0.0
    %v593 = vsel %vm501, %v577, 0.0
    %v594 = vsel %vm501, %v578, 0.0
    %v595 = vsel %vm501, %v579, 0.0
    %v596 = vsel %vm501, %v580, 0.0
    %v597 = vsel %vm501, %v581, 0.0
    %v598 = vmul.f32 %v582, %v582
    %v599 = vmul.f32 %v583, %v583
    %v600 = vmul.f32 %v584, %v584
    %v601 = vmul.f32 %v585, %v585
    %v602 = vmul.f32 %v586, %v586
    %v603 = vmul.f32 %v587, %v587
    %v604 = vmul.f32 %v588, %v588
    %v605 = vmul.f32 %v589, %v589
    %v606 = vmul.f32 %v590, %v590
    %v607 = vmul.f32 %v591, %v591
    %v608 = vmul.f32 %v592, %v592
    %v609 = vmul.f32 %v593, %v593
    %v610 = vmul.f32 %v594, %v594
    %v611 = vmul.f32 %v595, %v595
    %v612 = vmul.f32 %v596, %v596
    %v613 = vmul.f32 %v597, %v597
    %614 = vadd.xlane.f32.xlu0 %v598
    %v615 = vpop.xlane.xlu0 %614
    %616 = vadd.xlane.f32.xlu0 %v599
    %v617 = vpop.xlane.xlu0 %616
    %618 = vadd.xlane.f32.xlu0 %v600
    %v619 = vpop.xlane.xlu0 %618
    %620 = vadd.xlane.f32.xlu0 %v601
    %v621 = vpop.xlane.xlu0 %620
    %622 = vadd.xlane.f32.xlu0 %v602
    %v623 = vpop.xlane.xlu0 %622
    %624 = vadd.xlane.f32.xlu0 %v603
    %v625 = vpop.xlane.xlu0 %624
    %626 = vadd.xlane.f32.xlu0 %v604
    %v627 = vpop.xlane.xlu0 %626
    %628 = vadd.xlane.f32.xlu0 %v605
    %v629 = vpop.xlane.xlu0 %628
    %630 = vadd.xlane.f32.xlu0 %v606
    %v631 = vpop.xlane.xlu0 %630
    %632 = vadd.xlane.f32.xlu0 %v607
    %v633 = vpop.xlane.xlu0 %632
    %634 = vadd.xlane.f32.xlu0 %v608
    %v635 = vpop.xlane.xlu0 %634
    %636 = vadd.xlane.f32.xlu0 %v609
    %v637 = vpop.xlane.xlu0 %636
    %638 = vadd.xlane.f32.xlu0 %v610
    %v639 = vpop.xlane.xlu0 %638
    %640 = vadd.xlane.f32.xlu0 %v611
    %v641 = vpop.xlane.xlu0 %640
    %642 = vadd.xlane.f32.xlu0 %v612
    %v643 = vpop.xlane.xlu0 %642
    %644 = vadd.xlane.f32.xlu0 %v613
    %v645 = vpop.xlane.xlu0 %644
    %v646 = vmul.f32 %v615, 0.03125
    %v647 = vmul.f32 %v617, 0.03125
    %v648 = vmul.f32 %v619, 0.03125
    %v649 = vmul.f32 %v621, 0.03125
    %v650 = vmul.f32 %v623, 0.03125
    %v651 = vmul.f32 %v625, 0.03125
    %v652 = vmul.f32 %v627, 0.03125
    %v653 = vmul.f32 %v629, 0.03125
    %v654 = vmul.f32 %v631, 0.03125
    %v655 = vmul.f32 %v633, 0.03125
    %v656 = vmul.f32 %v635, 0.03125
    %v657 = vmul.f32 %v637, 0.03125
    %v658 = vmul.f32 %v639, 0.03125
    %v659 = vmul.f32 %v641, 0.03125
    %v660 = vmul.f32 %v643, 0.03125
    %v661 = vmul.f32 %v645, 0.03125
    %v662 = vadd.f32 %v646, 1e-06
    %v663 = vadd.f32 %v647, 1e-06
    %v664 = vadd.f32 %v648, 1e-06
    %v665 = vadd.f32 %v649, 1e-06
    %v666 = vadd.f32 %v650, 1e-06
    %v667 = vadd.f32 %v651, 1e-06
    %v668 = vadd.f32 %v652, 1e-06
    %v669 = vadd.f32 %v653, 1e-06
    %v670 = vadd.f32 %v654, 1e-06
    %v671 = vadd.f32 %v655, 1e-06
    %v672 = vadd.f32 %v656, 1e-06
    %v673 = vadd.f32 %v657, 1e-06
    %v674 = vadd.f32 %v658, 1e-06
    %v675 = vadd.f32 %v659, 1e-06
    %v676 = vadd.f32 %v660, 1e-06
    %v677 = vadd.f32 %v661, 1e-06
    %v678 = vrsqrt.pop %v662
    %v679 = vrsqrt.pop %v663
    %v680 = vrsqrt.pop %v664
    %v681 = vrsqrt.pop %v665
    %v682 = vrsqrt.pop %v666
    %v683 = vrsqrt.pop %v667
    %v684 = vrsqrt.pop %v668
    %v685 = vrsqrt.pop %v669
    %v686 = vrsqrt.pop %v670
    %v687 = vrsqrt.pop %v671
    %v688 = vrsqrt.pop %v672
    %v689 = vrsqrt.pop %v673
    %v690 = vrsqrt.pop %v674
    %v691 = vrsqrt.pop %v675
    %v692 = vrsqrt.pop %v676
    %v693 = vrsqrt.pop %v677
    %v694 = vmul.f32 %v582, %v678
    %v695 = vmul.f32 %v583, %v679
    %v696 = vmul.f32 %v584, %v680
    %v697 = vmul.f32 %v585, %v681
    %v698 = vmul.f32 %v586, %v682
    %v699 = vmul.f32 %v587, %v683
    %v700 = vmul.f32 %v588, %v684
    %v701 = vmul.f32 %v589, %v685
    %v702 = vmul.f32 %v590, %v686
    %v703 = vmul.f32 %v591, %v687
    %v704 = vmul.f32 %v592, %v688
    %v705 = vmul.f32 %v593, %v689
    %v706 = vmul.f32 %v594, %v690
    %v707 = vmul.f32 %v595, %v691
    %v708 = vmul.f32 %v596, %v692
    %v709 = vmul.f32 %v597, %v693
    %v710 = vld [vmem:[%s4] sm:$0x1]
    %v712 = vlaneseq
    %v713 = vshrl.u32 %v712, 7
    %v714 = vsub.s32 0, %v713
    %v715 = vrot.slane %v710, %v714
    %v717 = vmul.f32 %v694, %v715
    %v718 = vmul.f32 %v695, %v715
    %v719 = vmul.f32 %v696, %v715
    %v720 = vmul.f32 %v697, %v715
    %v721 = vmul.f32 %v698, %v715
    %v722 = vmul.f32 %v699, %v715
    %v723 = vmul.f32 %v700, %v715
    %v724 = vmul.f32 %v701, %v715
    %v725 = vmul.f32 %v702, %v715
    %v726 = vmul.f32 %v703, %v715
    %v727 = vmul.f32 %v704, %v715
    %v728 = vmul.f32 %v705, %v715
    %v729 = vmul.f32 %v706, %v715
    %v730 = vmul.f32 %v707, %v715
    %v731 = vmul.f32 %v708, %v715
    %v732 = vmul.f32 %v709, %v715
    %v733 = vld [vmem:[%s5] sm:$0x1]
    %v735 = vlaneseq
    %v736 = vshrl.u32 %v735, 7
    %v737 = vsub.s32 0, %v736
    %v738 = vrot.slane %v733, %v737
    %v740 = vadd.f32 %v717, %v738
    %v741 = vadd.f32 %v718, %v738
    %v742 = vadd.f32 %v719, %v738
    %v743 = vadd.f32 %v720, %v738
    %v744 = vadd.f32 %v721, %v738
    %v745 = vadd.f32 %v722, %v738
    %v746 = vadd.f32 %v723, %v738
    %v747 = vadd.f32 %v724, %v738
    %v748 = vadd.f32 %v725, %v738
    %v749 = vadd.f32 %v726, %v738
    %v750 = vadd.f32 %v727, %v738
    %v751 = vadd.f32 %v728, %v738
    %v752 = vadd.f32 %v729, %v738
    %v753 = vadd.f32 %v730, %v738
    %v754 = vadd.f32 %v731, %v738
    %v755 = vadd.f32 %v732, %v738
    %v756 = vmax.f32 %v740, 0.0
    %v757 = vmax.f32 %v741, 0.0
    %v758 = vmax.f32 %v742, 0.0
    %v759 = vmax.f32 %v743, 0.0
    %v760 = vmax.f32 %v744, 0.0
    %v761 = vmax.f32 %v745, 0.0
    %v762 = vmax.f32 %v746, 0.0
    %v763 = vmax.f32 %v747, 0.0
    %v764 = vmax.f32 %v748, 0.0
    %v765 = vmax.f32 %v749, 0.0
    %v766 = vmax.f32 %v750, 0.0
    %v767 = vmax.f32 %v751, 0.0
    %v768 = vmax.f32 %v752, 0.0
    %v769 = vmax.f32 %v753, 0.0
    %v770 = vmax.f32 %v754, 0.0
    %v771 = vmax.f32 %v755, 0.0
    %v772 = vpack.c.bf16 %v757, %v756
    %v773 = vpack.c.bf16 %v759, %v758
    %v774 = vpack.c.bf16 %v761, %v760
    %v775 = vpack.c.bf16 %v763, %v762
    %v776 = vpack.c.bf16 %v765, %v764
    %v777 = vpack.c.bf16 %v767, %v766
    %v778 = vpack.c.bf16 %v769, %v768
    %v779 = vpack.c.bf16 %v771, %v770
    %v780 = vld [vmem:[#allocation9] sm:$0xf]
    %v781 = vld [vmem:[#allocation9 + $0x4] sm:$0xf]
    %v782 = vld [vmem:[#allocation9 + $0x8] sm:$0xf]
    %v783 = vld [vmem:[#allocation9 + $0xc] sm:$0xf]
    %v784 = vld [vmem:[#allocation9 + $0x10] sm:$0xf]
    %v785 = vld [vmem:[#allocation9 + $0x14] sm:$0xf]
    %v786 = vld [vmem:[#allocation9 + $0x18] sm:$0xf]
    %v787 = vld [vmem:[#allocation9 + $0x1c] sm:$0xf]
    %v788 = vld [vmem:[#allocation9 + $0x20] sm:$0xf]
    %v789 = vld [vmem:[#allocation9 + $0x24] sm:$0xf]
    %v790 = vld [vmem:[#allocation9 + $0x28] sm:$0xf]
    %v791 = vld [vmem:[#allocation9 + $0x2c] sm:$0xf]
    %v792 = vld [vmem:[#allocation9 + $0x30] sm:$0xf]
    %v793 = vld [vmem:[#allocation9 + $0x34] sm:$0xf]
    %v794 = vld [vmem:[#allocation9 + $0x38] sm:$0xf]
    %v795 = vld [vmem:[#allocation9 + $0x3c] sm:$0xf]
    %v812 = vunpack.c.l.b16 %v780
    %v813 = vunpack.c.l.b16 %v781
    %v814 = vunpack.c.l.b16 %v782
    %v815 = vunpack.c.l.b16 %v783
    %v816 = vunpack.c.l.b16 %v784
    %v817 = vunpack.c.l.b16 %v785
    %v818 = vunpack.c.l.b16 %v786
    %v819 = vunpack.c.l.b16 %v787
    %v820 = vunpack.c.l.b16 %v788
    %v821 = vunpack.c.l.b16 %v789
    %v822 = vunpack.c.l.b16 %v790
    %v823 = vunpack.c.l.b16 %v791
    %v824 = vunpack.c.l.b16 %v792
    %v825 = vunpack.c.l.b16 %v793
    %v826 = vunpack.c.l.b16 %v794
    %v827 = vunpack.c.l.b16 %v795
    %v828 = vpack.c.b16 %v813, %v812
    %v829 = vpack.c.b16 %v815, %v814
    %v830 = vpack.c.b16 %v817, %v816
    %v831 = vpack.c.b16 %v819, %v818
    %v832 = vpack.c.b16 %v821, %v820
    %v833 = vpack.c.b16 %v823, %v822
    %v834 = vpack.c.b16 %v825, %v824
    %v835 = vpack.c.b16 %v827, %v826
    %844 = vmatprep.subr.bf16.mxu0 0
    %845 = vmatpush1.bf16.msra.mxu0 %v828
    %846 = vmatprep.subr.bf16.mxu0 0
    %847 = vmatpush1.bf16.msra.mxu0 %v829
    %848 = vmatprep.subr.bf16.mxu0 0
    %849 = vmatpush1.bf16.msra.mxu0 %v830
    %850 = vmatprep.subr.bf16.mxu0 0
    %851 = vmatpush1.bf16.msra.mxu0 %v831
    %852 = vmatprep.subr.bf16.mxu0 0
    %853 = vmatpush1.bf16.msra.mxu0 %v832
    %854 = vmatprep.subr.bf16.mxu0 0
    %855 = vmatpush1.bf16.msra.mxu0 %v833
    %856 = vmatprep.subr.bf16.mxu0 0
    %857 = vmatpush1.bf16.msra.mxu0 %v834
    %858 = vmatprep.subr.bf16.mxu0 0
    %859 = vmatpush1.bf16.msra.mxu0 %v835
    %860 = vmatprep.subr.bf16.mxu0 0
    %861 = vmatpush1.bf16.msra.mxu0 0
    %862 = vmatprep.subr.bf16.mxu0 0
    %863 = vmatpush1.bf16.msra.mxu0 0
    %864 = vmatprep.subr.bf16.mxu0 0
    %865 = vmatpush1.bf16.msra.mxu0 0
    %866 = vmatprep.subr.bf16.mxu0 0
    %867 = vmatpush1.bf16.msra.mxu0 0
    %868 = vmatprep.subr.bf16.mxu0 0
    %869 = vmatpush1.bf16.msra.mxu0 0
    %870 = vmatprep.subr.bf16.mxu0 0
    %871 = vmatpush1.bf16.msra.mxu0 0
    %872 = vmatprep.subr.bf16.mxu0 0
    %873 = vmatpush1.bf16.msra.mxu0 0
    %874 = vmatprep.subr.bf16.mxu0 0
    %875 = vmatpush1.bf16.msra.mxu0 0
    %876 = vmatprep.mubr.bf16.mxu0 0
    %877 = vmatmul.mubr.bf16.gmra.mrb[0].mxu0 %v772
    %v878 = vpop.f32.mrb[0].mxu0
    %v879 = vadd.f32 0.0, %v878
    %v880 = vpop.f32.mrb[0].mxu0
    %v881 = vpop.f32.mrb[0].mxu0
    %v882 = vadd.f32 0.0, %v881
    %v883 = vpop.f32.mrb[0].mxu0
    %884 = vmatprep.mubr.bf16.mxu0 0
    %885 = vmatmul.mubr.bf16.gmra.mrb[0].mxu0 %v773
    %v886 = vpop.f32.mrb[0].mxu0
    %v887 = vadd.f32 0.0, %v886
    %v888 = vpop.f32.mrb[0].mxu0
    %v889 = vpop.f32.mrb[0].mxu0
    %v890 = vadd.f32 0.0, %v889
    %v891 = vpop.f32.mrb[0].mxu0
    %892 = vmatprep.mubr.bf16.mxu0 0
    %893 = vmatmul.mubr.bf16.gmra.mrb[0].mxu0 %v774
    %v894 = vpop.f32.mrb[0].mxu0
    %v895 = vadd.f32 0.0, %v894
    %v896 = vpop.f32.mrb[0].mxu0
    %v897 = vpop.f32.mrb[0].mxu0
    %v898 = vadd.f32 0.0, %v897
    %v899 = vpop.f32.mrb[0].mxu0
    %900 = vmatprep.mubr.bf16.mxu0 0
    %901 = vmatmul.mubr.bf16.gmra.mrb[0].mxu0 %v775
    %v902 = vpop.f32.mrb[0].mxu0
    %v903 = vadd.f32 0.0, %v902
    %v904 = vpop.f32.mrb[0].mxu0
    %v905 = vpop.f32.mrb[0].mxu0
    %v906 = vadd.f32 0.0, %v905
    %v907 = vpop.f32.mrb[0].mxu0
    %908 = vmatprep.mubr.bf16.mxu0 0
    %909 = vmatmul.mubr.bf16.gmra.mrb[0].mxu0 %v776
    %v910 = vpop.f32.mrb[0].mxu0
    %v911 = vadd.f32 0.0, %v910
    %v912 = vpop.f32.mrb[0].mxu0
    %v913 = vpop.f32.mrb[0].mxu0
    %v914 = vadd.f32 0.0, %v913
    %v915 = vpop.f32.mrb[0].mxu0
    %916 = vmatprep.mubr.bf16.mxu0 0
    %917 = vmatmul.mubr.bf16.gmra.mrb[0].mxu0 %v777
    %v918 = vpop.f32.mrb[0].mxu0
    %v919 = vadd.f32 0.0, %v918
    %v920 = vpop.f32.mrb[0].mxu0
    %v921 = vpop.f32.mrb[0].mxu0
    %v922 = vadd.f32 0.0, %v921
    %v923 = vpop.f32.mrb[0].mxu0
    %924 = vmatprep.mubr.bf16.mxu0 0
    %925 = vmatmul.mubr.bf16.gmra.mrb[0].mxu0 %v778
    %v926 = vpop.f32.mrb[0].mxu0
    %v927 = vadd.f32 0.0, %v926
    %v928 = vpop.f32.mrb[0].mxu0
    %v929 = vpop.f32.mrb[0].mxu0
    %v930 = vadd.f32 0.0, %v929
    %v931 = vpop.f32.mrb[0].mxu0
    %932 = vmatprep.mubr.bf16.mxu0 0
    %933 = vmatmul.mubr.bf16.gmra.mrb[0].mxu0 %v779
    %v934 = vpop.f32.mrb[0].mxu0
    %v935 = vadd.f32 0.0, %v934
    %v936 = vpop.f32.mrb[0].mxu0
    %v937 = vpop.f32.mrb[0].mxu0
    %v938 = vadd.f32 0.0, %v937
    %v939 = vpop.f32.mrb[0].mxu0
    %940 = vdwg.mxu0
    %v941 = vpack.c.bf16 %v882, %v879
    %v942 = vpack.c.bf16 %v890, %v887
    %v943 = vpack.c.bf16 %v898, %v895
    %v944 = vpack.c.bf16 %v906, %v903
    %v945 = vpack.c.bf16 %v914, %v911
    %v946 = vpack.c.bf16 %v922, %v919
    %v947 = vpack.c.bf16 %v930, %v927
    %v948 = vpack.c.bf16 %v938, %v935
    %v949 = vld [vmem:[%s7] sm:$0x1]
    %v951 = vlaneseq
    %v952 = vshrl.u32 %v951, 7
    %v953 = vsub.s32 0, %v952
    %v954 = vrot.slane %v949, %v953
    %956 = vmatprep.subr.bf16.mxu0 0
    %957 = vmatpush1.bf16.msra.mxu0 %v941
    %958 = vmatprep.subr.bf16.mxu0 0
    %959 = vmatpush1.bf16.msra.mxu0 %v942
    %960 = vmatprep.subr.bf16.mxu0 0
    %961 = vmatpush1.bf16.msra.mxu0 %v943
    %962 = vmatprep.subr.bf16.mxu0 0
    %963 = vmatpush1.bf16.msra.mxu0 %v944
    %964 = vmatprep.subr.bf16.mxu0 0
    %965 = vmatpush1.bf16.msra.mxu0 %v945
    %966 = vmatprep.subr.bf16.mxu0 0
    %967 = vmatpush1.bf16.msra.mxu0 %v946
    %968 = vmatprep.subr.bf16.mxu0 0
    %969 = vmatpush1.bf16.msra.mxu0 %v947
    %970 = vmatprep.subr.bf16.mxu0 0
    %971 = vmatpush1.bf16.msra.mxu0 %v948
    %972 = vmatprep.subr.bf16.mxu0 0
    %973 = vmatpush1.bf16.msra.mxu0 0
    %974 = vmatprep.subr.bf16.mxu0 0
    %975 = vmatpush1.bf16.msra.mxu0 0
    %976 = vmatprep.subr.bf16.mxu0 0
    %977 = vmatpush1.bf16.msra.mxu0 0
    %978 = vmatprep.subr.bf16.mxu0 0
    %979 = vmatpush1.bf16.msra.mxu0 0
    %980 = vmatprep.subr.bf16.mxu0 0
    %981 = vmatpush1.bf16.msra.mxu0 0
    %982 = vmatprep.subr.bf16.mxu0 0
    %983 = vmatpush1.bf16.msra.mxu0 0
    %984 = vmatprep.subr.bf16.mxu0 0
    %985 = vmatpush1.bf16.msra.mxu0 0
    %986 = vmatprep.subr.bf16.mxu0 0
    %987 = vmatpush1.bf16.msra.mxu0 0
    %988 = vmatprep.mubr.bf16.mxu0 0
    %989 = vmatmul.mubr.bf16.gmra.mrb[0].mxu0 %v386
    %v990 = vpop.f32.mrb[0].mxu0
    %v991 = vadd.f32 %v954, %v990
    %v992 = vpop.f32.mrb[0].mxu0
    %v993 = vpop.f32.mrb[0].mxu0
    %v994 = vadd.f32 %v954, %v993
    %v995 = vpop.f32.mrb[0].mxu0
    %996 = vmatprep.mubr.bf16.mxu0 0
    %997 = vmatmul.mubr.bf16.gmra.mrb[0].mxu0 %v387
    %v998 = vpop.f32.mrb[0].mxu0
    %v999 = vadd.f32 %v954, %v998
    %v1000 = vpop.f32.mrb[0].mxu0
    %v1001 = vpop.f32.mrb[0].mxu0
    %v1002 = vadd.f32 %v954, %v1001
    %v1003 = vpop.f32.mrb[0].mxu0
    %1004 = vmatprep.mubr.bf16.mxu0 0
    %1005 = vmatmul.mubr.bf16.gmra.mrb[0].mxu0 %v388
    %v1006 = vpop.f32.mrb[0].mxu0
    %v1007 = vadd.f32 %v954, %v1006
    %v1008 = vpop.f32.mrb[0].mxu0
    %v1009 = vpop.f32.mrb[0].mxu0
    %v1010 = vadd.f32 %v954, %v1009
    %v1011 = vpop.f32.mrb[0].mxu0
    %1012 = vmatprep.mubr.bf16.mxu0 0
    %1013 = vmatmul.mubr.bf16.gmra.mrb[0].mxu0 %v389
    %v1014 = vpop.f32.mrb[0].mxu0
    %v1015 = vadd.f32 %v954, %v1014
    %v1016 = vpop.f32.mrb[0].mxu0
    %v1017 = vpop.f32.mrb[0].mxu0
    %v1018 = vadd.f32 %v954, %v1017
    %v1019 = vpop.f32.mrb[0].mxu0
    %1020 = vmatprep.mubr.bf16.mxu0 0
    %1021 = vmatmul.mubr.bf16.gmra.mrb[0].mxu0 %v390
    %v1022 = vpop.f32.mrb[0].mxu0
    %v1023 = vadd.f32 %v954, %v1022
    %v1024 = vpop.f32.mrb[0].mxu0
    %v1025 = vpop.f32.mrb[0].mxu0
    %v1026 = vadd.f32 %v954, %v1025
    %v1027 = vpop.f32.mrb[0].mxu0
    %1028 = vmatprep.mubr.bf16.mxu0 0
    %1029 = vmatmul.mubr.bf16.gmra.mrb[0].mxu0 %v391
    %v1030 = vpop.f32.mrb[0].mxu0
    %v1031 = vadd.f32 %v954, %v1030
    %v1032 = vpop.f32.mrb[0].mxu0
    %v1033 = vpop.f32.mrb[0].mxu0
    %v1034 = vadd.f32 %v954, %v1033
    %v1035 = vpop.f32.mrb[0].mxu0
    %1036 = vmatprep.mubr.bf16.mxu0 0
    %1037 = vmatmul.mubr.bf16.gmra.mrb[0].mxu0 %v392
    %v1038 = vpop.f32.mrb[0].mxu0
    %v1039 = vadd.f32 %v954, %v1038
    %v1040 = vpop.f32.mrb[0].mxu0
    %v1041 = vpop.f32.mrb[0].mxu0
    %v1042 = vadd.f32 %v954, %v1041
    %v1043 = vpop.f32.mrb[0].mxu0
    %1044 = vmatprep.mubr.bf16.mxu0 0
    %1045 = vmatmul.mubr.bf16.gmra.mrb[0].mxu0 %v393
    %v1046 = vpop.f32.mrb[0].mxu0
    %v1047 = vadd.f32 %v954, %v1046
    %v1048 = vpop.f32.mrb[0].mxu0
    %v1049 = vpop.f32.mrb[0].mxu0
    %v1050 = vadd.f32 %v954, %v1049
    %v1051 = vpop.f32.mrb[0].mxu0
    %1052 = vdwg.mxu0
    %1053 = vst [vmem:[%s8] sm:$0xff] %v991
    %1054 = vst [vmem:[%s8 + $0x8] sm:$0xff] %v994
    %1055 = vst [vmem:[%s8 + $0x10] sm:$0xff] %v999
    %1056 = vst [vmem:[%s8 + $0x18] sm:$0xff] %v1002
    %1057 = vst [vmem:[%s8 + $0x20] sm:$0xff] %v1007
    %1058 = vst [vmem:[%s8 + $0x28] sm:$0xff] %v1010
    %1059 = vst [vmem:[%s8 + $0x30] sm:$0xff] %v1015
    %1060 = vst [vmem:[%s8 + $0x38] sm:$0xff] %v1018
    %1061 = vst [vmem:[%s8 + $0x40] sm:$0xff] %v1023
    %1062 = vst [vmem:[%s8 + $0x48] sm:$0xff] %v1026
    %1063 = vst [vmem:[%s8 + $0x50] sm:$0xff] %v1031
    %1064 = vst [vmem:[%s8 + $0x58] sm:$0xff] %v1034
    %1065 = vst [vmem:[%s8 + $0x60] sm:$0xff] %v1039
    %1066 = vst [vmem:[%s8 + $0x68] sm:$0xff] %v1042
    %1067 = vst [vmem:[%s8 + $0x70] sm:$0xff] %v1047
    %1068 = vst [vmem:[%s8 + $0x78] sm:$0xff] %v1050
    // Predicated region
    $region54: #{gcn_forward.1} parent=1 // pred_check
      _
    $region55: #{gcn_forward.1} parent=1 // pred_check_branch
      %1070 = sbr.rel (0) target = $region57
    $region56: #{gcn_forward.1} parent=1 // pred_region
      _
    $region57: #{gcn_forward.1} parent=1 // pred_fallthru
      _
    // Predicated region
    $region58: #{gcn_forward.1} parent=1 // pred_check
      _
    $region59: #{gcn_forward.1} parent=1 // pred_check_branch
      %1072 = sbr.rel (0) target = $region61
    $region60: #{gcn_forward.1} parent=1 // pred_region
      _
    $region61: #{gcn_forward.1} parent=1 // pred_fallthru
      _
    %1073 = vsyncpa [#allocation3], 1
    %1074 = vsyncpa [#allocation5], 1
    %1075 = vsyncpa [#allocation8], 1

</llo_original>
